<compile_context>
chip_gen: v6e
topology: v6e:2x2x1
jax: 0.10.0
libtpu: 0.0.40
codegen_flags: <defaults>
</compile_context>

<pallas_src>
import functools

import jax
import jax.numpy as jnp
from jax import lax
from jax.experimental import pallas as pl
from jax.experimental.pallas import tpu as pltpu

# ---------------- problem configuration (matches a CycleGAN conv block) -----
IN_CH = 4
OUT_CH = 8
K = 3          # kernel_size
PAD = 1        # padding (reflect)
STRIDE = 1
EPS = 1e-5     # InstanceNorm2d default eps


def _conv_block_kernel(p_ref, w_ref, b_ref, o_ref, *, N, HW):
    """Single grid step over the whole (small) batch.

    p_ref : (C_in*K*K, N*HW)  im2col patch matrix (lane-dense last dim)
    w_ref : (C_out, C_in*K*K) flattened conv weights
    b_ref : (C_out, 1)        conv bias
    o_ref : (N, C_out, HW)    lane-dense output slab
    """
    # Entire convolution (all kernel offsets, all images) as one MXU matmul,
    # accumulated in f32.
    acc = jnp.dot(w_ref[...], p_ref[...],
                  preferred_element_type=jnp.float32)        # (C_out, N*HW)
    acc = acc + b_ref[...]                                   # bias broadcast

    inv_hw = 1.0 / HW
    # Per-image InstanceNorm2d (biased variance, no affine) + ReLU.
    # N is a small static constant; the slices are lane-aligned (HW is a
    # multiple of 128) so they are cheap vreg selections, not relayouts.
    for n in range(N):
        seg = acc[:, n * HW:(n + 1) * HW]                    # (C_out, HW)
        s = jnp.sum(seg, axis=1, keepdims=True)              # (C_out, 1)
        ss = jnp.sum(seg * seg, axis=1, keepdims=True)       # (C_out, 1)
        mean = s * inv_hw
        var = ss * inv_hw - mean * mean                      # biased variance
        inv_std = lax.rsqrt(var + EPS)
        o_ref[n, :, :] = jnp.maximum((seg - mean) * inv_std,
                                     0.0).astype(o_ref.dtype)


def _im2col(x_pad, H, W):
    """(N, C_in, Hp, Wp) -> (C_in*K*K, N*H*W); contraction index = (c, kh, kw)."""
    N, C_in = x_pad.shape[0], x_pad.shape[1]
    cols = []
    for kh in range(K):
        for kw in range(K):
            cols.append(x_pad[:, :, kh:kh + H, kw:kw + W])   # (N, C_in, H, W)
    p = jnp.stack(cols, axis=2)                              # (N, C_in, K*K, H, W)
    p = p.transpose(1, 2, 0, 3, 4)                           # (C_in, K*K, N, H, W)
    return p.reshape(C_in * K * K, N * H * W)


def conv_block_forward(x, w, b):
    """x: (N, C_in, H, W) f32; w: (C_out, C_in, K, K); b: (C_out,)."""
    N, C_in, H, W = x.shape
    C_out = w.shape[0]
    HW = H * W
    assert STRIDE == 1, "kernel written for stride=1"
    assert H > PAD and W > PAD, "reflect padding requires spatial dims > pad"
    assert HW % 128 == 0, "H*W must be a multiple of 128 for lane-dense tiles"

    # Wrapper-side glue (plain XLA): reflect pad, im2col, weight/bias flatten.
    # TODO(synk): at real CycleGAN sizes, build patches/halos inside the kernel
    # from VMEM scratch and tile over N / spatial with a 'parallel' grid axis
    # (to use v7x's 2nd TensorCore and respect its 64 MiB VMEM).
    x_pad = jnp.pad(x, ((0, 0), (0, 0), (PAD, PAD), (PAD, PAD)), mode="reflect")
    patches = _im2col(x_pad, H, W)                           # (C_in*K*K, N*HW)
    w2 = w.reshape(C_out, C_in * K * K)
    b2 = b.reshape(C_out, 1)

    kernel = functools.partial(_conv_block_kernel, N=N, HW=HW)

    out = pl.pallas_call(
        kernel,
        out_shape=jax.ShapeDtypeStruct((N, C_out, HW), x.dtype),
        grid_spec=pltpu.PrefetchScalarGridSpec(
            num_scalar_prefetch=0,
            grid=(1,),
            in_specs=[
                pl.BlockSpec((C_in * K * K, N * HW), lambda i: (0, 0)),
                pl.BlockSpec((C_out, C_in * K * K), lambda i: (0, 0)),
                pl.BlockSpec((C_out, 1), lambda i: (0, 0)),
            ],
            out_specs=pl.BlockSpec((N, C_out, HW), lambda i: (0, 0, 0)),
        ),
        compiler_params=pltpu.CompilerParams(
            dimension_semantics=("arbitrary",)),
    )(patches, w2, b2)

    return out.reshape(N, C_out, H, W)


def _reference(x, w, b):
    """Pure-JAX reference: reflect-pad conv + instance norm + relu."""
    x_pad = jnp.pad(x, ((0, 0), (0, 0), (PAD, PAD), (PAD, PAD)), mode="reflect")
    y = lax.conv_general_dilated(
        x_pad, w, window_strides=(STRIDE, STRIDE), padding="VALID",
        dimension_numbers=("NCHW", "OIHW", "NCHW"))
    y = y + b.reshape(1, -1, 1, 1)
    mean = jnp.mean(y, axis=(2, 3), keepdims=True)
    var = jnp.mean((y - mean) ** 2, axis=(2, 3), keepdims=True)
    y = (y - mean) * lax.rsqrt(var + EPS)
    return jnp.maximum(y, 0.0)


if __name__ == "__main__":
    key = jax.random.PRNGKey(0)
    kx, kw, kb = jax.random.split(key, 3)

    N, H, W = 2, 16, 16
    x = jax.random.normal(kx, (N, IN_CH, H, W), dtype=jnp.float32)

    # Deterministic parameter init (Conv2d-style uniform fan-in bound).
    fan_in = IN_CH * K * K
    bound = 1.0 / (fan_in ** 0.5)
    w = jax.random.uniform(kw, (OUT_CH, IN_CH, K, K), jnp.float32,
                           minval=-bound, maxval=bound)
    b = jax.random.uniform(kb, (OUT_CH,), jnp.float32,
                           minval=-bound, maxval=bound)

    out = jax.block_until_ready(conv_block_forward(x, w, b))
    ref = jax.block_until_ready(_reference(x, w, b))

    assert out.shape == (N, OUT_CH, H, W)
    assert jnp.allclose(out, ref, rtol=1e-3, atol=1e-3), "mismatch vs reference"
    print("KERNEL_OK")
</pallas_src>

<mosaic_0001>
module attributes {stable_mosaic.version = 11 : i64} {
  func.func @_conv_block_kernel(%arg0: i32, %arg1: memref<36x512xf32, #tpu.memory_space<vmem>>, %arg2: memref<8x36xf32, #tpu.memory_space<vmem>>, %arg3: memref<8x1xf32, #tpu.memory_space<vmem>>, %arg4: memref<2x8x256xf32, #tpu.memory_space<vmem>>) attributes {dimension_semantics = [#tpu.dimension_semantics<arbitrary>], iteration_bounds = array<i64: 1>, scalar_prefetch = 0 : i64, scratch_operands = 0 : i64, tpu.core_type = #tpu.core_type<tc>, window_params = [{pipeline_mode = #tpu.pipeline_mode<synchronous>, transform_indices = @transform_0, window_bounds = array<i64: 36, 512>}, {pipeline_mode = #tpu.pipeline_mode<synchronous>, transform_indices = @transform_1, window_bounds = array<i64: 8, 36>}, {pipeline_mode = #tpu.pipeline_mode<synchronous>, transform_indices = @transform_2, window_bounds = array<i64: 8, 1>}, {pipeline_mode = #tpu.pipeline_mode<synchronous>, transform_indices = @transform_3, window_bounds = array<i64: 2, 8, 256>}]} {
    %c0 = arith.constant 0 : index
    %c0_0 = arith.constant 0 : index
    %0 = vector.load %arg2[%c0, %c0_0] : memref<8x36xf32, #tpu.memory_space<vmem>>, vector<8x36xf32>
    %c0_1 = arith.constant 0 : index
    %c0_2 = arith.constant 0 : index
    %1 = vector.load %arg1[%c0_1, %c0_2] : memref<36x512xf32, #tpu.memory_space<vmem>>, vector<36x512xf32>
    %cst = arith.constant dense<0.000000e+00> : vector<8x512xf32>
    %2 = tpu.matmul %0, %1, %cst {dimension_numbers = #tpu.dot_dimension_numbers<[1], [0], [0], [1], [0, 0, 1, 1], [], []>} : vector<8x36xf32>, vector<36x512xf32>, vector<8x512xf32> -> vector<8x512xf32>
    %c0_3 = arith.constant 0 : index
    %c0_4 = arith.constant 0 : index
    %3 = vector.load %arg3[%c0_3, %c0_4] : memref<8x1xf32, #tpu.memory_space<vmem>>, vector<8x1xf32>
    %4 = vector.broadcast %3 : vector<8x1xf32> to vector<8x512xf32>
    %5 = arith.addf %2, %4 : vector<8x512xf32>
    %6 = vector.extract_strided_slice %5 {offsets = [0, 0], sizes = [8, 256], strides = [1, 1]} : vector<8x512xf32> to vector<8x256xf32>
    %cst_5 = arith.constant dense<0.000000e+00> : vector<8xf32>
    %7 = vector.multi_reduction <add>, %6, %cst_5 [1] : vector<8x256xf32> to vector<8xf32>
    %8 = vector.shape_cast %7 : vector<8xf32> to vector<8x1xf32>
    %9 = arith.mulf %6, %6 : vector<8x256xf32>
    %cst_6 = arith.constant dense<0.000000e+00> : vector<8xf32>
    %10 = vector.multi_reduction <add>, %9, %cst_6 [1] : vector<8x256xf32> to vector<8xf32>
    %11 = vector.shape_cast %10 : vector<8xf32> to vector<8x1xf32>
    %cst_7 = arith.constant 3.906250e-03 : f32
    %12 = vector.broadcast %cst_7 : f32 to vector<8x1xf32>
    %13 = arith.mulf %8, %12 : vector<8x1xf32>
    %cst_8 = arith.constant 3.906250e-03 : f32
    %14 = vector.broadcast %cst_8 : f32 to vector<8x1xf32>
    %15 = arith.mulf %11, %14 : vector<8x1xf32>
    %16 = arith.mulf %13, %13 : vector<8x1xf32>
    %17 = arith.subf %15, %16 : vector<8x1xf32>
    %cst_9 = arith.constant 9.99999974E-6 : f32
    %18 = vector.broadcast %cst_9 : f32 to vector<8x1xf32>
    %19 = arith.addf %17, %18 : vector<8x1xf32>
    %20 = math.rsqrt %19 : vector<8x1xf32>
    %21 = vector.broadcast %13 : vector<8x1xf32> to vector<8x256xf32>
    %22 = arith.subf %6, %21 : vector<8x256xf32>
    %23 = vector.broadcast %20 : vector<8x1xf32> to vector<8x256xf32>
    %24 = arith.mulf %22, %23 : vector<8x256xf32>
    %cst_10 = arith.constant 0.000000e+00 : f32
    %25 = vector.broadcast %cst_10 : f32 to vector<8x256xf32>
    %26 = arith.maximumf %24, %25 : vector<8x256xf32>
    %c0_11 = arith.constant 0 : index
    %c0_12 = arith.constant 0 : index
    %c0_13 = arith.constant 0 : index
    %27 = vector.load %arg4[%c0_11, %c0_12, %c0_13] : memref<2x8x256xf32, #tpu.memory_space<vmem>>, vector<1x8x256xf32>
    %28 = vector.shape_cast %27 : vector<1x8x256xf32> to vector<8x256xf32>
    %29 = vector.shape_cast %26 : vector<8x256xf32> to vector<1x8x256xf32>
    tpu.vector_store %arg4[%c0_11, %c0_12, %c0_13], %29 {strides = array<i32>} : memref<2x8x256xf32, #tpu.memory_space<vmem>>, vector<1x8x256xf32>,
    %30 = vector.extract_strided_slice %5 {offsets = [0, 256], sizes = [8, 256], strides = [1, 1]} : vector<8x512xf32> to vector<8x256xf32>
    %cst_14 = arith.constant dense<0.000000e+00> : vector<8xf32>
    %31 = vector.multi_reduction <add>, %30, %cst_14 [1] : vector<8x256xf32> to vector<8xf32>
    %32 = vector.shape_cast %31 : vector<8xf32> to vector<8x1xf32>
    %33 = arith.mulf %30, %30 : vector<8x256xf32>
    %cst_15 = arith.constant dense<0.000000e+00> : vector<8xf32>
    %34 = vector.multi_reduction <add>, %33, %cst_15 [1] : vector<8x256xf32> to vector<8xf32>
    %35 = vector.shape_cast %34 : vector<8xf32> to vector<8x1xf32>
    %cst_16 = arith.constant 3.906250e-03 : f32
    %36 = vector.broadcast %cst_16 : f32 to vector<8x1xf32>
    %37 = arith.mulf %32, %36 : vector<8x1xf32>
    %cst_17 = arith.constant 3.906250e-03 : f32
    %38 = vector.broadcast %cst_17 : f32 to vector<8x1xf32>
    %39 = arith.mulf %35, %38 : vector<8x1xf32>
    %40 = arith.mulf %37, %37 : vector<8x1xf32>
    %41 = arith.subf %39, %40 : vector<8x1xf32>
    %cst_18 = arith.constant 9.99999974E-6 : f32
    %42 = vector.broadcast %cst_18 : f32 to vector<8x1xf32>
    %43 = arith.addf %41, %42 : vector<8x1xf32>
    %44 = math.rsqrt %43 : vector<8x1xf32>
    %45 = vector.broadcast %37 : vector<8x1xf32> to vector<8x256xf32>
    %46 = arith.subf %30, %45 : vector<8x256xf32>
    %47 = vector.broadcast %44 : vector<8x1xf32> to vector<8x256xf32>
    %48 = arith.mulf %46, %47 : vector<8x256xf32>
    %cst_19 = arith.constant 0.000000e+00 : f32
    %49 = vector.broadcast %cst_19 : f32 to vector<8x256xf32>
    %50 = arith.maximumf %48, %49 : vector<8x256xf32>
    %c1 = arith.constant 1 : index
    %c0_20 = arith.constant 0 : index
    %c0_21 = arith.constant 0 : index
    %51 = vector.load %arg4[%c1, %c0_20, %c0_21] : memref<2x8x256xf32, #tpu.memory_space<vmem>>, vector<1x8x256xf32>
    %52 = vector.shape_cast %51 : vector<1x8x256xf32> to vector<8x256xf32>
    %53 = vector.shape_cast %50 : vector<8x256xf32> to vector<1x8x256xf32>
    tpu.vector_store %arg4[%c1, %c0_20, %c0_21], %53 {strides = array<i32>} : memref<2x8x256xf32, #tpu.memory_space<vmem>>, vector<1x8x256xf32>,
    return
  }
  func.func @transform_0(%arg0: i32) -> (i32, i32) {
    %c0_i32 = arith.constant 0 : i32
    %c0_i32_0 = arith.constant 0 : i32
    %c0_i32_1 = arith.constant 0 : i32
    return %c0_i32, %c0_i32_0 : i32, i32
  }
  func.func @transform_1(%arg0: i32) -> (i32, i32) {
    %c0_i32 = arith.constant 0 : i32
    %c0_i32_0 = arith.constant 0 : i32
    %c0_i32_1 = arith.constant 0 : i32
    return %c0_i32, %c0_i32_0 : i32, i32
  }
  func.func @transform_2(%arg0: i32) -> (i32, i32) {
    %c0_i32 = arith.constant 0 : i32
    %c0_i32_0 = arith.constant 0 : i32
    %c0_i32_1 = arith.constant 0 : i32
    return %c0_i32, %c0_i32_0 : i32, i32
  }
  func.func @transform_3(%arg0: i32) -> (i32, i32, i32) {
    %c0_i32 = arith.constant 0 : i32
    %c0_i32_0 = arith.constant 0 : i32
    %c0_i32_1 = arith.constant 0 : i32
    %c0_i32_2 = arith.constant 0 : i32
    return %c0_i32, %c0_i32_0, %c0_i32_1 : i32, i32, i32
  }
}

</mosaic_0001>

<llo_original>
// kernel: tpu_custom_call.1
$region0: #{tpu_custom_call.1}
  #allocation0 [shape = 'u32[]', space=smem, size = 0x4, offset = 0x4, fixed_abs, tag = 'smem constant byte address 0x4 - core index']
  #allocation1 [shape = 'u32[144,128]{1,0:T(1,128)}', space=vmem, size = 0x12000, scoped, tag = 'internal scratch']
  %s0 = inlined_call_operand.hbm [shape: f32[36,512], index: 0, kind: input, shape index: {}]
  %s1 = inlined_call_operand.vmem [shape: f32[8,36], index: 1, kind: input, shape index: {}]
  %s2 = inlined_call_operand.vmem [shape: f32[8,1], index: 2, kind: input, shape index: {}]
  %s3 = inlined_call_operand.hbm [shape: f32[2,8,256], index: 3, kind: output, shape index: {}]
  %s4 = sld [smem:[#allocation0]]
  $region26: #{tpu_custom_call.1} parent=0
    _
  %s6 = ssub.s32 1, %s4
  %s7 = scalar_select 0, %s6, %s4
  $region1: #{tpu_custom_call.1} parent=0
    #allocation2 [shape = 'u8[81920]{0}', space=vmem, size = 0x14000, scoped, tag = 'input window, operand 0, single buffered']
    #allocation3 [shape = 's32[1]{0}', space=sflag, size = 0x4, scoped, tag = 'scoped memory for tpu_custom_call.1']
    #allocation4 [shape = 's32[1]{0}', space=sflag, size = 0x4, scoped, tag = 'scoped memory for tpu_custom_call.1']
    #allocation5 [shape = 'u8[16384]{0}', space=vmem, size = 0x4000, scoped, tag = 'output window, operand 0, single buffered']
    %8 = vsyncpa [#allocation3], 0
    %9 = vsyncpa [#allocation4], 0
    // Predicated region
    $region2: #{tpu_custom_call.1} parent=1 // pred_check
      _
    $region3: #{tpu_custom_call.1} parent=1 // pred_check_branch
      %11 = sbr.rel (0) target = $region5
    $region4: #{tpu_custom_call.1} parent=1 // pred_region
      %s13 = ssub.s32 2560, 2560
      %14 = vsyncadd [#allocation3], %s13
      %s15 = sshll.u32 [#allocation2], 4
      %s16 = int_to_ptr.vmem [resolvable:$true] %s15
      %21 = dma.hbm_to_vmem [thread:$0]  %s0, 2560, %s16, [#allocation3], 512, 512, 32
    $region5: #{tpu_custom_call.1} parent=1 // pred_fallthru
      _
    // Predicated region
    $region6: #{tpu_custom_call.1} parent=1 // pred_check
      _
    $region7: #{tpu_custom_call.1} parent=1 // pred_check_branch
      %23 = sbr.rel (0) target = $region9
    $region8: #{tpu_custom_call.1} parent=1 // pred_region
      _
    $region9: #{tpu_custom_call.1} parent=1 // pred_fallthru
      _
    // Predicated region
    $region10: #{tpu_custom_call.1} parent=1 // pred_check
      _
    $region11: #{tpu_custom_call.1} parent=1 // pred_check_branch
      %25 = sbr.rel (0) target = $region13
    $region12: #{tpu_custom_call.1} parent=1 // pred_region
      _
    $region13: #{tpu_custom_call.1} parent=1 // pred_fallthru
      _
    // Predicated region
    $region14: #{tpu_custom_call.1} parent=1 // pred_check
      _
    $region15: #{tpu_custom_call.1} parent=1 // pred_check_branch
      %27 = sbr.rel (0) target = $region17
    $region16: #{tpu_custom_call.1} parent=1 // pred_region
      %28 = dma.done [#allocation3], 2560
    $region17: #{tpu_custom_call.1} parent=1 // pred_fallthru
      _
    %v29 = vld [vmem:[%s1] sm:$0xff]
    %v30 = vld [vmem:[#allocation2] sm:$0xff]
    %v31 = vld [vmem:[#allocation2 + $0x8] sm:$0xff]
    %v32 = vld [vmem:[#allocation2 + $0x10] sm:$0xff]
    %v33 = vld [vmem:[#allocation2 + $0x18] sm:$0xff]
    %v34 = vld [vmem:[#allocation2 + $0x20] sm:$0xff]
    %v35 = vld [vmem:[#allocation2 + $0x28] sm:$0xff]
    %v36 = vld [vmem:[#allocation2 + $0x30] sm:$0xff]
    %v37 = vld [vmem:[#allocation2 + $0x38] sm:$0xff]
    %v38 = vld [vmem:[#allocation2 + $0x40] sm:$0xff]
    %v39 = vld [vmem:[#allocation2 + $0x48] sm:$0xff]
    %v40 = vld [vmem:[#allocation2 + $0x50] sm:$0xff]
    %v41 = vld [vmem:[#allocation2 + $0x58] sm:$0xff]
    %v42 = vld [vmem:[#allocation2 + $0x60] sm:$0xff]
    %v43 = vld [vmem:[#allocation2 + $0x68] sm:$0xff]
    %v44 = vld [vmem:[#allocation2 + $0x70] sm:$0xff]
    %v45 = vld [vmem:[#allocation2 + $0x78] sm:$0xff]
    %v46 = vld [vmem:[#allocation2 + $0x80] sm:$0xf]
    %v47 = vld [vmem:[#allocation2 + $0x88] sm:$0xf]
    %v48 = vld [vmem:[#allocation2 + $0x90] sm:$0xf]
    %v49 = vld [vmem:[#allocation2 + $0x98] sm:$0xf]
    %v50 = vld [vmem:[%s2] sm:$0xff]
    %52 = vset.pattern.permute.xlu0 0
    %53 = vperm.xlu0 %52, %v50
    %v54 = vpop.permute.xlu0 %53
    %vm56 = vcmask 293888
    %v58 = vsel %vm56, %v29, 0
    %vm60 = vcmask 1043456
    %v62 = vsel %vm60, %v46, 0
    %v65 = vsel %vm60, %v47, 0
    %v68 = vsel %vm60, %v48, 0
    %v71 = vsel %vm60, %v49, 0
    %73 = vmatprep.subr.mxu0 0.0
    %74 = vmatpush1.msra.mxu0 0.0
    %75 = vmatprep.subr.mxu0 0.0
    %76 = vmatpush1.msra.mxu0 0.0
    %77 = vmatprep.subr.mxu0 0.0
    %78 = vmatpush1.msra.mxu0 0.0
    %79 = vmatprep.subr.mxu0 0.0
    %80 = vmatpush1.msra.mxu0 0.0
    %81 = vmatprep.subr.mxu0 0.0
    %82 = vmatpush1.msra.mxu0 0.0
    %83 = vmatprep.subr.mxu0 0.0
    %84 = vmatpush1.msra.mxu0 0.0
    %85 = vmatprep.subr.mxu0 0.0
    %86 = vmatpush1.msra.mxu0 0.0
    %87 = vmatprep.subr.mxu0 0.0
    %88 = vmatpush1.msra.mxu0 0.0
    %89 = vmatprep.subr.mxu0 0.0
    %90 = vmatpush1.msra.mxu0 0.0
    %91 = vmatprep.subr.mxu0 0.0
    %92 = vmatpush1.msra.mxu0 0.0
    %93 = vmatprep.subr.mxu0 0.0
    %94 = vmatpush1.msra.mxu0 0.0
    %95 = vmatprep.subr.mxu0 %v65
    %96 = vmatpush1.msra.mxu0 %v62
    %97 = vmatprep.subr.mxu0 %v43
    %98 = vmatpush1.msra.mxu0 %v42
    %99 = vmatprep.subr.mxu0 %v39
    %100 = vmatpush1.msra.mxu0 %v38
    %101 = vmatprep.subr.mxu0 %v35
    %102 = vmatpush1.msra.mxu0 %v34
    %103 = vmatprep.subr.mxu0 %v31
    %104 = vmatpush1.msra.mxu0 %v30
    %105 = vmatprep.subr.mxu0 0.0
    %106 = vmatpush2.msra.mxu0 0.0
    %107 = vmatprep.subr.mxu0 0.0
    %108 = vmatpush2.msra.mxu0 0.0
    %109 = vmatprep.subr.mxu0 0.0
    %110 = vmatpush2.msra.mxu0 0.0
    %111 = vmatprep.subr.mxu0 0.0
    %112 = vmatpush2.msra.mxu0 0.0
    %113 = vmatprep.subr.mxu0 0.0
    %114 = vmatpush2.msra.mxu0 0.0
    %115 = vmatprep.subr.mxu0 0.0
    %116 = vmatpush2.msra.mxu0 0.0
    %117 = vmatprep.subr.mxu0 0.0
    %118 = vmatpush2.msra.mxu0 0.0
    %119 = vmatprep.subr.mxu0 0.0
    %120 = vmatpush2.msra.mxu0 0.0
    %121 = vmatprep.subr.mxu0 0.0
    %122 = vmatpush2.msra.mxu0 0.0
    %123 = vmatprep.subr.mxu0 0.0
    %124 = vmatpush2.msra.mxu0 0.0
    %125 = vmatprep.subr.mxu0 0.0
    %126 = vmatpush2.msra.mxu0 0.0
    %127 = vmatprep.subr.mxu0 0.0
    %128 = vmatpush2.msra.mxu0 0.0
    %129 = vmatprep.subr.mxu0 0.0
    %130 = vmatpush2.msra.mxu0 0.0
    %131 = vmatprep.subr.mxu0 0.0
    %132 = vmatpush2.msra.mxu0 0.0
    %133 = vmatprep.subr.mxu0 0.0
    %134 = vmatpush2.msra.mxu0 0.0
    %135 = vmatprep.subr.mxu0 0.0
    %136 = vmatpush2.msra.mxu0 0.0
    %137 = vmatprep.mubr.f32.mxu0 0.0
    %138 = vmatmul.mubr.f32.gmra.mxu0 %v58
    %v139 = vpop.f32.mrf.mxu0
    %v140 = vadd.f32 %v54, %v139
    %v141 = vpop.f32.mrf.mxu0
    %v142 = vadd.f32 %v54, %v141
    %143 = vdwg.mxu0
    %144 = vmatprep.subr.mxu0 0.0
    %145 = vmatpush1.msra.mxu0 0.0
    %146 = vmatprep.subr.mxu0 0.0
    %147 = vmatpush1.msra.mxu0 0.0
    %148 = vmatprep.subr.mxu0 0.0
    %149 = vmatpush1.msra.mxu0 0.0
    %150 = vmatprep.subr.mxu0 0.0
    %151 = vmatpush1.msra.mxu0 0.0
    %152 = vmatprep.subr.mxu0 0.0
    %153 = vmatpush1.msra.mxu0 0.0
    %154 = vmatprep.subr.mxu0 0.0
    %155 = vmatpush1.msra.mxu0 0.0
    %156 = vmatprep.subr.mxu0 0.0
    %157 = vmatpush1.msra.mxu0 0.0
    %158 = vmatprep.subr.mxu0 0.0
    %159 = vmatpush1.msra.mxu0 0.0
    %160 = vmatprep.subr.mxu0 0.0
    %161 = vmatpush1.msra.mxu0 0.0
    %162 = vmatprep.subr.mxu0 0.0
    %163 = vmatpush1.msra.mxu0 0.0
    %164 = vmatprep.subr.mxu0 0.0
    %165 = vmatpush1.msra.mxu0 0.0
    %166 = vmatprep.subr.mxu0 %v71
    %167 = vmatpush1.msra.mxu0 %v68
    %168 = vmatprep.subr.mxu0 %v45
    %169 = vmatpush1.msra.mxu0 %v44
    %170 = vmatprep.subr.mxu0 %v41
    %171 = vmatpush1.msra.mxu0 %v40
    %172 = vmatprep.subr.mxu0 %v37
    %173 = vmatpush1.msra.mxu0 %v36
    %174 = vmatprep.subr.mxu0 %v33
    %175 = vmatpush1.msra.mxu0 %v32
    %176 = vmatprep.subr.mxu0 0.0
    %177 = vmatpush2.msra.mxu0 0.0
    %178 = vmatprep.subr.mxu0 0.0
    %179 = vmatpush2.msra.mxu0 0.0
    %180 = vmatprep.subr.mxu0 0.0
    %181 = vmatpush2.msra.mxu0 0.0
    %182 = vmatprep.subr.mxu0 0.0
    %183 = vmatpush2.msra.mxu0 0.0
    %184 = vmatprep.subr.mxu0 0.0
    %185 = vmatpush2.msra.mxu0 0.0
    %186 = vmatprep.subr.mxu0 0.0
    %187 = vmatpush2.msra.mxu0 0.0
    %188 = vmatprep.subr.mxu0 0.0
    %189 = vmatpush2.msra.mxu0 0.0
    %190 = vmatprep.subr.mxu0 0.0
    %191 = vmatpush2.msra.mxu0 0.0
    %192 = vmatprep.subr.mxu0 0.0
    %193 = vmatpush2.msra.mxu0 0.0
    %194 = vmatprep.subr.mxu0 0.0
    %195 = vmatpush2.msra.mxu0 0.0
    %196 = vmatprep.subr.mxu0 0.0
    %197 = vmatpush2.msra.mxu0 0.0
    %198 = vmatprep.subr.mxu0 0.0
    %199 = vmatpush2.msra.mxu0 0.0
    %200 = vmatprep.subr.mxu0 0.0
    %201 = vmatpush2.msra.mxu0 0.0
    %202 = vmatprep.subr.mxu0 0.0
    %203 = vmatpush2.msra.mxu0 0.0
    %204 = vmatprep.subr.mxu0 0.0
    %205 = vmatpush2.msra.mxu0 0.0
    %206 = vmatprep.subr.mxu0 0.0
    %207 = vmatpush2.msra.mxu0 0.0
    %208 = vmatprep.mubr.f32.mxu0 0.0
    %209 = vmatmul.mubr.f32.gmra.mxu0 %v58
    %v210 = vpop.f32.mrf.mxu0
    %v211 = vadd.f32 %v54, %v210
    %v212 = vpop.f32.mrf.mxu0
    %v213 = vadd.f32 %v54, %v212
    %214 = vdwg.mxu0
    %v215 = vadd.f32 %v140, %v142
    %216 = vadd.xlane.f32.xlu0 %v215
    %v217 = vpop.xlane.xlu0 %216
    %v218 = vmul.f32 %v140, %v140
    %v219 = vmul.f32 %v142, %v142
    %v220 = vadd.f32 %v218, %v219
    %221 = vadd.xlane.f32.xlu0 %v220
    %v222 = vpop.xlane.xlu0 %221
    %v223 = vmul.f32 %v217, 0.00390625
    %v224 = vmul.f32 %v222, 0.00390625
    %v225 = vmul.f32 %v223, %v223
    %v226 = vsub.f32 %v224, %v225
    %v227 = vadd.f32 %v226, 1e-05
    %v228 = vrsqrt.pop %v227
    %v229 = vsub.f32 %v140, %v223
    %v230 = vsub.f32 %v142, %v223
    %v231 = vmul.f32 %v229, %v228
    %v232 = vmul.f32 %v230, %v228
    %v233 = vmax.f32 %v231, 0.0
    %v234 = vmax.f32 %v232, 0.0
    %235 = vst [vmem:[#allocation5] sm:$0xff] %v233
    %236 = vst [vmem:[#allocation5 + $0x8] sm:$0xff] %v234
    %v237 = vadd.f32 %v211, %v213
    %238 = vadd.xlane.f32.xlu0 %v237
    %v239 = vpop.xlane.xlu0 %238
    %v240 = vmul.f32 %v211, %v211
    %v241 = vmul.f32 %v213, %v213
    %v242 = vadd.f32 %v240, %v241
    %243 = vadd.xlane.f32.xlu0 %v242
    %v244 = vpop.xlane.xlu0 %243
    %v245 = vmul.f32 %v239, 0.00390625
    %v246 = vmul.f32 %v244, 0.00390625
    %v247 = vmul.f32 %v245, %v245
    %v248 = vsub.f32 %v246, %v247
    %v249 = vadd.f32 %v248, 1e-05
    %v250 = vrsqrt.pop %v249
    %v251 = vsub.f32 %v211, %v245
    %v252 = vsub.f32 %v213, %v245
    %v253 = vmul.f32 %v251, %v250
    %v254 = vmul.f32 %v252, %v250
    %v255 = vmax.f32 %v253, 0.0
    %v256 = vmax.f32 %v254, 0.0
    %s257 = scalar_lea.vmem [#allocation5], 16
    %258 = vst [vmem:[%s257] sm:$0xff] %v255
    %259 = vst [vmem:[%s257 + $0x8] sm:$0xff] %v256
    // Predicated region
    $region18: #{tpu_custom_call.1} parent=1 // pred_check
      _
    $region19: #{tpu_custom_call.1} parent=1 // pred_check_branch
      %261 = sbr.rel (0) target = $region21
    $region20: #{tpu_custom_call.1} parent=1 // pred_region
      %s263 = ssub.s32 512, 512
      %264 = vsyncadd [#allocation4], %s263
      %s265 = sshll.u32 [#allocation5], 4
      %s266 = int_to_ptr.vmem [resolvable:$true] %s265
      %271 = dma.vmem_to_hbm [thread:$0]  %s266, 512, %s3, [#allocation4], 256, 256, 16
    $region21: #{tpu_custom_call.1} parent=1 // pred_fallthru
      _
    // Predicated region
    $region22: #{tpu_custom_call.1} parent=1 // pred_check
      _
    $region23: #{tpu_custom_call.1} parent=1 // pred_check_branch
      %273 = sbr.rel (0) target = $region25
    $region24: #{tpu_custom_call.1} parent=1 // pred_region
      %274 = dma.done [#allocation4], 512
    $region25: #{tpu_custom_call.1} parent=1 // pred_fallthru
      _
    %275 = vsyncpa [#allocation3], 1
    %276 = vsyncpa [#allocation4], 1

</llo_original>
